<compile_context>
chip_gen: v7x
topology: tpu7x:2x2x1
jax: 0.10.0
libtpu: 0.0.40
codegen_flags: <defaults>
</compile_context>

<pallas_src>
import functools

import jax
import jax.numpy as jnp
from jax.experimental import pallas as pl
from jax.experimental.pallas import tpu as pltpu


# Cap on rows per tile: the f32 cast temporaries and (in the fallback layout)
# the lane-padded output block grow with tile_rows; 16384 keeps the worst case
# comfortably under v7x's 48 MiB scoped-VMEM budget.
_MAX_TILE_ROWS = 16384


def _store_norms(norms_ref, norms_col, lane_dense):
    if lane_dense:
        # Lane-dense store: one small sublane->lane relayout per row tile,
        # unmasked vst, 4 B/row of HBM traffic (vs the 512 B/row (N_pad, 1)
        # layout the review flagged as the 'l1' VMEM/epilogue blow-up).
        norms_ref[0, :] = norms_col[:, 0]
    else:
        norms_ref[...] = norms_col


def _row_norm_kernel(x_ref, norms_ref, *acc_refs, tile_d, d_total, lane_dense):
    """Per-row L2 norms.  acc_refs is () when there is a single D chunk."""
    j = pl.program_id(1)                       # feature-chunk (reduction) index

    xf = x_ref[...].astype(jnp.float32)        # (tile_rows, tile_d)
    if d_total % tile_d != 0:
        # Mask feature columns past D in the ragged last chunk.  Use a select
        # (not a multiply) so stale NaN/Inf garbage in the padded region of the
        # edge DMA can never propagate into valid rows.
        col = jax.lax.broadcasted_iota(jnp.int32, (1, tile_d), 1) + j * tile_d
        xf = jnp.where(col < d_total, xf, 0.0)

    partial_sq = jnp.sum(xf * xf, axis=1, keepdims=True)      # (tile_rows, 1)

    # NOTE: rows of a ragged last *row* tile hold whatever the edge DMA left
    # behind; their norms are garbage by design and are sliced off in the
    # wrapper before any reduction touches them.
    if not acc_refs:
        # Single D chunk: no carried state, no scratch.
        _store_norms(norms_ref, jnp.sqrt(partial_sq), lane_dense)
    else:
        acc_ref, = acc_refs
        nd = pl.num_programs(1)

        @pl.when(j == 0)
        def _init():
            acc_ref[...] = jnp.zeros_like(acc_ref)

        acc_ref[...] += partial_sq

        @pl.when(j == nd - 1)
        def _finalize():
            _store_norms(norms_ref, jnp.sqrt(acc_ref[...]), lane_dense)


def _sublane(itemsize):
    # sublane packing: f32 -> 8 rows, bf16/f16 -> 16, int8/fp8 -> 32
    return {4: 8, 2: 16, 1: 32}.get(itemsize, 8)


def _round_up(a, b):
    return -(-a // b) * b


def _vmem_budget():
    """(per-block streaming budget, scoped-vmem limit) per TPU generation."""
    try:
        cap = pltpu.get_tpu_info().vmem_capacity_bytes
    except Exception:
        cap = 128 * 1024 * 1024
    if cap >= 96 * 1024 * 1024:        # v5e / v6e: 128 MiB physical VMEM
        return 8 * 1024 * 1024, 64 * 1024 * 1024
    # v7x: 64 MiB per TensorCore -> leave headroom for double buffers and the
    # f32 cast temporaries of a bf16 block.
    return 8 * 1024 * 1024, 48 * 1024 * 1024


def _choose_tiles(n_rows, d, itemsize, budget):
    sub = _sublane(itemsize)
    n_pad_min = _round_up(n_rows, sub)
    row_bytes = d * itemsize
    min_rows = min(128, n_pad_min)
    if d <= 128 or row_bytes * min_rows <= budget:
        # Full-D blocks: single reduction step per row tile, no acc scratch.
        tile_d = d
        tr = max(sub, budget // max(1, row_bytes))
        tr = (tr // 128) * 128 if tr >= 128 else (tr // sub) * sub
        tr = min(tr, _MAX_TILE_ROWS)
        tile_rows = max(sub, min(tr, n_pad_min))
    else:
        # Large feature dim: tile D as well (innermost reduction axis).
        tile_rows = min(512, n_pad_min)
        tile_d = (budget // (tile_rows * itemsize) // 128) * 128
        tile_d = int(max(128, min(tile_d, _round_up(d, 128))))
    return int(tile_rows), int(tile_d)


def _row_norms(x, tile_rows, tile_d, vmem_limit, lane_dense):
    """Pallas call returning the (N,) f32 vector of per-row L2 norms."""
    n, d = x.shape
    num_row_tiles = pl.cdiv(n, tile_rows)
    num_d_tiles = pl.cdiv(d, tile_d)
    multi_d = num_d_tiles > 1

    kernel = functools.partial(_row_norm_kernel, tile_d=tile_d, d_total=d,
                               lane_dense=lane_dense)

    if lane_dense:
        out_shape = jax.ShapeDtypeStruct((num_row_tiles, tile_rows), jnp.float32)
        out_spec = pl.BlockSpec((1, tile_rows), lambda i, j: (i, 0))
    else:
        out_shape = jax.ShapeDtypeStruct((num_row_tiles * tile_rows, 1),
                                         jnp.float32)
        out_spec = pl.BlockSpec((tile_rows, 1), lambda i, j: (i, 0))

    scratch = ([pltpu.VMEM((tile_rows, 1), jnp.float32)] if multi_d else [])

    # TODO(synk): if DMA is still exposed on v7x after the larger tiles, bump
    # the input spec to pipeline_mode=pl.Buffered(3).
    out = pl.pallas_call(
        kernel,
        out_shape=out_shape,
        grid=(num_row_tiles, num_d_tiles),
        in_specs=[pl.BlockSpec((tile_rows, tile_d), lambda i, j: (i, j))],
        out_specs=out_spec,
        scratch_shapes=scratch,
        compiler_params=pltpu.CompilerParams(
            # Row axis is stateless across tiles -> "parallel" lets Mosaic
            # shard it across both v7x TensorCores; the D axis carries the
            # per-row accumulator -> "arbitrary".
            dimension_semantics=("parallel", "arbitrary"),
            vmem_limit_bytes=vmem_limit),
    )(x)
    return out.reshape(-1)[:n]


def ring_loss2(x, radius, *, loss_weight=1.0, loss_type='auto',
               tile_rows=None, tile_d=None):
    """Functional RingLoss2 forward.  Returns (loss_scalar, updated_radius)."""
    x = jnp.asarray(x)                      # keep native dtype; cast per tile
    if x.ndim != 2:
        raise ValueError("RingLoss2 expects a 2-D (batch, features) input "
                         "(PyTorch reduces over dim=1).")
    radius = jnp.asarray(radius, jnp.float32).reshape(())
    n, d = x.shape
    itemsize = jnp.dtype(x.dtype).itemsize

    budget, vmem_limit = _vmem_budget()
    auto_rows, auto_d = _choose_tiles(n, d, itemsize, budget)
    tile_rows = auto_rows if tile_rows is None else int(tile_rows)
    tile_d = auto_d if tile_d is None else int(tile_d)

    # Prefer the lane-dense norm layout; fall back to the (N_pad, 1) column
    # layout if this Mosaic version cannot lower the sublane->lane relayout.
    try:
        norms = _row_norms(x, tile_rows, tile_d, vmem_limit, lane_dense=True)
    except Exception:
        norms = _row_norms(x, tile_rows, tile_d, vmem_limit, lane_dense=False)

    # ---- O(N) epilogue: tiny XLA fusion over the norms vector. -------------
    # Computed directly from the norms (no quadratic identity) -> no
    # catastrophic cancellation; mirrors the PyTorch forward exactly.
    mean_norm = jnp.mean(norms)
    radius_eff = jnp.where(radius < 0.0, mean_norm, radius)   # in-place fill_
    if loss_type == 'l1':
        delta = jnp.abs(norms - radius_eff)
        # F.smooth_l1_loss, beta=1.0; symmetric in its args -> loss1 == loss2.
        smooth = jnp.where(delta < 1.0, 0.5 * delta * delta, delta - 0.5)
        sl1 = jnp.mean(smooth)
        ringloss = (sl1 + sl1) * loss_weight
    elif loss_type == 'auto':
        denom = jnp.maximum(mean_norm, 0.5)        # .detach().clamp(min=0.5)
        diff = (norms - radius_eff) / denom
        ringloss = jnp.mean(diff * diff) * loss_weight
    else:                                          # plain L2
        diff = norms - radius_eff
        ringloss = jnp.mean(diff * diff) * loss_weight
    return ringloss, radius_eff


def _reference(x, radius, loss_weight=1.0, loss_type='auto'):
    # Pure-JAX reference mirroring the PyTorch forward.
    x = jnp.asarray(x).astype(jnp.float32)
    norms = jnp.sqrt(jnp.sum(x * x, axis=1))
    mean_norm = jnp.mean(norms)
    radius = jnp.asarray(radius, jnp.float32).reshape(())
    radius_eff = jnp.where(radius < 0.0, mean_norm, radius)
    if loss_type == 'l1':
        d = jnp.abs(norms - radius_eff)
        sl1 = jnp.mean(jnp.where(d < 1.0, 0.5 * d * d, d - 0.5))
        return (sl1 + sl1) * loss_weight, radius_eff
    elif loss_type == 'auto':
        denom = jnp.maximum(mean_norm, 0.5)
        diff = (norms - radius_eff) / denom
        return jnp.mean(diff * diff) * loss_weight, radius_eff
    diff = norms - radius_eff
    return jnp.mean(diff * diff) * loss_weight, radius_eff


if __name__ == "__main__":
    key = jax.random.PRNGKey(0)
    # Small shapes; N and D deliberately not multiples of the tiles so both the
    # ragged last row tile and the masked last feature chunk are exercised.
    N, D = 50, 200
    x = jax.random.normal(key, (N, D), dtype=jnp.float32)
    radius_init = jnp.array(-1.0, dtype=jnp.float32)    # triggers auto-fill

    for loss_type in ("auto", "l2", "l1"):
        loss, new_r = ring_loss2(x, radius_init, loss_weight=1.0,
                                 loss_type=loss_type, tile_rows=16, tile_d=128)
        loss = jax.block_until_ready(loss)
        new_r = jax.block_until_ready(new_r)
        ref_loss, ref_r = _reference(x, radius_init, 1.0, loss_type)
        assert jnp.allclose(loss, ref_loss, atol=1e-5, rtol=1e-4), \
            (loss_type, float(loss), float(ref_loss))
        assert jnp.allclose(new_r, ref_r, atol=1e-5, rtol=1e-4), \
            (loss_type, float(new_r), float(ref_r))

        # Second call with the (now positive) updated radius, as PyTorch would.
        loss2, _ = ring_loss2(x, new_r, loss_weight=1.0, loss_type=loss_type,
                              tile_rows=16, tile_d=128)
        ref_loss2, _ = _reference(x, new_r, 1.0, loss_type)
        assert jnp.allclose(jax.block_until_ready(loss2), ref_loss2,
                            atol=1e-5, rtol=1e-4), \
            (loss_type, float(loss2), float(ref_loss2))

    # Auto tile selection path (no overrides): single full-D block per row tile.
    loss_a, _ = ring_loss2(x, radius_init, loss_weight=1.0, loss_type="auto")
    ref_a, _ = _reference(x, radius_init, 1.0, "auto")
    assert jnp.allclose(jax.block_until_ready(loss_a), ref_a,
                        atol=1e-5, rtol=1e-4), (float(loss_a), float(ref_a))

    # bf16 path: no wrapper upcast, data streamed from HBM in bf16.
    xb = x.astype(jnp.bfloat16)
    loss_b, _ = ring_loss2(xb, radius_init, loss_weight=1.0, loss_type="auto",
                           tile_rows=32, tile_d=128)
    ref_b, _ = _reference(xb, radius_init, 1.0, "auto")
    assert jnp.allclose(jax.block_until_ready(loss_b), ref_b,
                        atol=1e-3, rtol=1e-2), (float(loss_b), float(ref_b))

    print("KERNEL_OK")
</pallas_src>

<mosaic_0001>
module attributes {stable_mosaic.version = 11 : i64} {
  func.func @_row_norm_kernel(%arg0: i32, %arg1: i32, %arg2: memref<16x128xf32, #tpu.memory_space<vmem>>, %arg3: memref<16x1xf32, #tpu.memory_space<vmem>>, %arg4: memref<16x1xf32, #tpu.memory_space<vmem>>) attributes {dimension_semantics = [#tpu.dimension_semantics<parallel>, #tpu.dimension_semantics<arbitrary>], iteration_bounds = array<i64: 4, 2>, scalar_prefetch = 0 : i64, scratch_operands = 1 : i64, tpu.core_type = #tpu.core_type<tc>, window_params = [{transform_indices = @transform_0, window_bounds = array<i64: 16, 128>}, {transform_indices = @transform_1, window_bounds = array<i64: 16, 1>}]} {
    %c0 = arith.constant 0 : index
    %c0_0 = arith.constant 0 : index
    %0 = vector.load %arg2[%c0, %c0_0] : memref<16x128xf32, #tpu.memory_space<vmem>>, vector<16x128xf32>
    %1 = tpu.iota {dimensions = array<i32: 1>} : vector<1x128xi32>
    %c128_i32 = arith.constant 128 : i32
    %2 = arith.muli %arg1, %c128_i32 : i32
    %3 = vector.broadcast %2 : i32 to vector<1x128xi32>
    %4 = arith.addi %1, %3 : vector<1x128xi32>
    %c200_i32 = arith.constant 200 : i32
    %5 = vector.broadcast %c200_i32 : i32 to vector<1x128xi32>
    %6 = arith.cmpi slt, %4, %5 : vector<1x128xi32>
    %cst = arith.constant 0.000000e+00 : f32
    %7 = vector.shape_cast %6 : vector<1x128xi1> to vector<1x128xi1>
    %8 = vector.broadcast %7 : vector<1x128xi1> to vector<16x128xi1>
    %9 = vector.broadcast %cst : f32 to vector<16x128xf32>
    %10 = arith.select %8, %0, %9 : vector<16x128xi1>, vector<16x128xf32>
    %11 = arith.mulf %10, %10 : vector<16x128xf32>
    %cst_1 = arith.constant dense<0.000000e+00> : vector<16xf32>
    %12 = vector.multi_reduction <add>, %11, %cst_1 [1] : vector<16x128xf32> to vector<16xf32>
    %13 = vector.shape_cast %12 : vector<16xf32> to vector<16x1xf32>
    %c0_i32 = arith.constant 0 : i32
    %14 = arith.cmpi eq, %arg1, %c0_i32 : i32
    %15 = arith.extui %14 : i1 to i32
    %c0_i32_2 = arith.constant 0 : i32
    %16 = arith.cmpi ne, %15, %c0_i32_2 : i32
    scf.if %16 {
      %cst_8 = arith.constant 0.000000e+00 : f32
      %23 = vector.broadcast %cst_8 : f32 to vector<16x1xf32>
      %c0_9 = arith.constant 0 : index
      %c0_10 = arith.constant 0 : index
      %24 = vector.load %arg4[%c0_9, %c0_10] : memref<16x1xf32, #tpu.memory_space<vmem>>, vector<16x1xf32>
      tpu.vector_store %arg4[%c0_9, %c0_10], %23 {strides = array<i32>} : memref<16x1xf32, #tpu.memory_space<vmem>>, vector<16x1xf32>,
    } else {
    }
    %c0_3 = arith.constant 0 : index
    %c0_4 = arith.constant 0 : index
    %17 = vector.load %arg4[%c0_3, %c0_4] : memref<16x1xf32, #tpu.memory_space<vmem>>, vector<16x1xf32>
    %18 = arith.addf %17, %13 : vector<16x1xf32>
    %c0_5 = arith.constant 0 : index
    %c0_6 = arith.constant 0 : index
    %19 = vector.load %arg4[%c0_5, %c0_6] : memref<16x1xf32, #tpu.memory_space<vmem>>, vector<16x1xf32>
    tpu.vector_store %arg4[%c0_5, %c0_6], %18 {strides = array<i32>} : memref<16x1xf32, #tpu.memory_space<vmem>>, vector<16x1xf32>,
    %c1_i32 = arith.constant 1 : i32
    %20 = arith.cmpi eq, %arg1, %c1_i32 : i32
    %21 = arith.extui %20 : i1 to i32
    %c0_i32_7 = arith.constant 0 : i32
    %22 = arith.cmpi ne, %21, %c0_i32_7 : i32
    scf.if %22 {
      %c0_8 = arith.constant 0 : index
      %c0_9 = arith.constant 0 : index
      %23 = vector.load %arg4[%c0_8, %c0_9] : memref<16x1xf32, #tpu.memory_space<vmem>>, vector<16x1xf32>
      %24 = math.sqrt %23 : vector<16x1xf32>
      %c0_10 = arith.constant 0 : index
      %c0_11 = arith.constant 0 : index
      %25 = vector.load %arg3[%c0_10, %c0_11] : memref<16x1xf32, #tpu.memory_space<vmem>>, vector<16x1xf32>
      tpu.vector_store %arg3[%c0_10, %c0_11], %24 {strides = array<i32>} : memref<16x1xf32, #tpu.memory_space<vmem>>, vector<16x1xf32>,
    } else {
    }
    return
  }
  func.func @transform_0(%arg0: i32, %arg1: i32) -> (i32, i32) {
    %c0_i32 = arith.constant 0 : i32
    return %arg0, %arg1 : i32, i32
  }
  func.func @transform_1(%arg0: i32, %arg1: i32) -> (i32, i32) {
    %c0_i32 = arith.constant 0 : i32
    %c0_i32_0 = arith.constant 0 : i32
    return %arg0, %c0_i32 : i32, i32
  }
}

</mosaic_0001>

<llo_original>
// kernel: tpu_custom_call.1
$region0: #{tpu_custom_call.1}
  #allocation0 [shape = 'u32[]', space=smem, size = 0x4, offset = 0x4, fixed_abs, tag = 'smem constant byte address 0x4 - core index']
  #allocation1 [shape = 'u32[144,128]{1,0:T(1,128)}', space=vmem, size = 0x12000, scoped, tag = 'internal scratch']
  #allocation2 [shape = 'f32[16,1]{1,0:T(8,128)}', space=vmem, size = 0x2000, scoped, tag = 'scratch operand']
  %s0 = inlined_call_operand.hbm [shape: f32[50,200], index: 0, kind: input, shape index: {}]
  %s1 = inlined_call_operand.hbm [shape: f32[64,1], index: 1, kind: output, shape index: {}]
  %s2 = sld [smem:[#allocation0]]
  $region49: #{tpu_custom_call.1} parent=0
    _
  %s4 = ssub.s32 1, %s2
  %s5 = scalar_select 0, %s4, %s2
  $region1: #{tpu_custom_call.1} parent=0
    #allocation3 [shape = 'u8[16384]{0}', space=vmem, size = 0x4000, scoped, tag = 'input window, operand 0']
    #allocation4 [shape = 's32[2]{0}', space=sflag, size = 0x8, scoped, tag = 'scoped memory for tpu_custom_call.1']
    #allocation5 [shape = 's32[2]{0}', space=sflag, size = 0x8, scoped, tag = 'scoped memory for tpu_custom_call.1']
    #allocation6 [shape = 'u8[16384]{0}', space=vmem, size = 0x4000, scoped, tag = 'output window, operand 0']
    %6 = vsyncpa [#allocation4], 0
    %s7 = scalar_lea.sflag [#allocation4], 1
    %8 = vsyncpa %s7, 0
    %9 = vsyncpa [#allocation5], 0
    %s10 = scalar_lea.sflag [#allocation5], 1
    %11 = vsyncpa %s10, 0
    loop: start=0, step=1, limit=10
    $region2: #{tpu_custom_call.1} parent=1 // loop_pre_header
      _
    $region3: #{tpu_custom_call.1} parent=1 // loop_header
      %s13 = sphi 0, %s17
      %p14 = scmp.ge.s32.totalorder %s13, 10
      %s20 = sphi 0, %s32
      %s21 = sphi 0, %s28
      %s22 = sphi 0, %s20
      %s23 = sphi 0, %s21
      %s24 = sphi 0, %s22
      %s25 = sphi 0, %s23
      %s37 = sphi 0, %s39
      %s40 = sphi 0, %s37
      %s41 = sphi 0, %s40
      %s57 = sphi 0, %s41
      %s63 = sphi 0, %s65
      %s66 = sphi 0, %s63
      %s67 = sphi 0, %s66
      %s83 = sphi 0, %s67
    $region4: #{tpu_custom_call.1} parent=1 // loop_header_branch
      %16 = sbr.rel (%p14) target = $region8
    $region5: #{tpu_custom_call.1} parent=1 // loop_body
      %s18 = ssub.s32 %s13, 1
      %s19 = ssub.s32 %s13, 2
      %s26 = sadd.s32 1, %s21
      %p27 = scmp.ge.s32.totalorder %s26, 2
      %s28 = scalar_select %p27, 0, %s26
      %s29 = sadd.s32 1, %s20
      %s30 = scalar_select %p27, %s29, %s20
      %p31 = scmp.ge.s32.totalorder %s30, 4
      %s32 = scalar_select %p31, 0, %s30
      %s33 = ssub.s32 %s20, %s32
      %s34 = ssub.s32 %s21, %s28
      %s35 = sor.u32 %s33, %s34
      %p36 = scmp.eq.s32.totalorder %s35, 0
      %s38 = sadd.s32 %s37, 1
      %s39 = scalar_select %p36, %s37, %s38
      %p42 = pneg %p36
      %p43 = scmp.eq.s32.totalorder %s13, 7
      %p44 = por %p42, %p43
      %p45 = scmp.ne.s32.totalorder %s37, %s40
      %p46 = scmp.eq.s32.totalorder %s13, 0
      %p47 = por %p45, %p46
      %p48 = scmp.ne.s32.totalorder %s37, %s40
      %p49 = scmp.eq.s32.totalorder %s18, 7
      %p50 = por %p48, %p49
      %p51 = scmp.ne.s32.totalorder %s40, %s41
      %p52 = scmp.eq.s32.totalorder %s18, 0
      %p53 = por %p51, %p52
      %p54 = scmp.ne.s32.totalorder %s40, %s41
      %p55 = scmp.eq.s32.totalorder %s19, 7
      %p56 = por %p54, %p55
      %p58 = scmp.ne.s32.totalorder %s41, %s57
      %p59 = scmp.eq.s32.totalorder %s19, 0
      %p60 = por %p58, %p59
      %s61 = ssub.s32 %s20, %s32
      %p62 = scmp.eq.s32.totalorder %s61, 0
      %s64 = sadd.s32 %s63, 1
      %s65 = scalar_select %p62, %s63, %s64
      %p68 = pneg %p62
      %p69 = scmp.eq.s32.totalorder %s13, 7
      %p70 = por %p68, %p69
      %p71 = scmp.ne.s32.totalorder %s63, %s66
      %p72 = scmp.eq.s32.totalorder %s13, 0
      %p73 = por %p71, %p72
      %p74 = scmp.ne.s32.totalorder %s63, %s66
      %p75 = scmp.eq.s32.totalorder %s18, 7
      %p76 = por %p74, %p75
      %p77 = scmp.ne.s32.totalorder %s66, %s67
      %p78 = scmp.eq.s32.totalorder %s18, 0
      %p79 = por %p77, %p78
      %p80 = scmp.ne.s32.totalorder %s66, %s67
      %p81 = scmp.eq.s32.totalorder %s19, 7
      %p82 = por %p80, %p81
      %p84 = scmp.ne.s32.totalorder %s67, %s83
      %p85 = scmp.eq.s32.totalorder %s19, 0
      %p86 = por %p84, %p85
      %p87 = scmp.le.s32.totalorder 1, %s13
      %p88 = scmp.lt.s32.totalorder %s13, 9
      %p89 = pnand %p87, %p88
      %p90 = pneg %p89
      // Predicated region
      $region9: #{tpu_custom_call.1} parent=5 // pred_check
        _
      $region10: #{tpu_custom_call.1} parent=5 // pred_check_branch
        %92 = sbr.rel (%p89) target = $region12
      $region11: #{tpu_custom_call.1} parent=5 // pred_region
        %s93 = ssub.s32 %s13, 1
      $region12: #{tpu_custom_call.1} parent=5 // pred_fallthru
        _
      %p94 = scmp.lt.s32.totalorder %s13, 8
      // Predicated region
      $region13: #{tpu_custom_call.1} parent=5 // pred_check
        %p95 = pneg %p94
      $region14: #{tpu_custom_call.1} parent=5 // pred_check_branch
        %97 = sbr.rel (%p95) target = $region16
      $region15: #{tpu_custom_call.1} parent=5 // pred_region
        // Predicated region
        $region17: #{tpu_custom_call.1} parent=15 // pred_check
          %p98 = pneg %p47
        $region18: #{tpu_custom_call.1} parent=15 // pred_check_branch
          %100 = sbr.rel (%p98) target = $region20
        $region19: #{tpu_custom_call.1} parent=15 // pred_region
          %s101 = sand.u32 %s37, 1
          %s102 = scalar_lea.sflag [#allocation4], %s101
          %s103 = sand.u32 %s37, 1
          %s104 = smul.addr %s103, 16
          %s105 = scalar_lea.vmem [#allocation3], %s104
          %s106 = smul.u32 2, %s20
          %s107 = ssub.s32 7, %s106
          %p108 = scmp.lt.s32.totalorder %s107, 2
          %s109 = scalar_select %p108, %s107, 2
          %s110 = smul.u32 128, %s109
          %s112 = ssub.s32 256, %s110
          %113 = vsyncadd %s102, %s112
          %p114 = scmp.ne.s32.totalorder 0, %s110
          %s115 = smul.addr %s106, 2
          %s116 = sadd.s32 %s21, %s115
          %s117 = smul.addr %s116, 128
          %s118 = scalar_lea.hbm %s0, %s117
          %s119 = smul.u32 8, %s109
          %s120 = sshll.u32 %s105, 4
          %s121 = int_to_ptr.vmem [resolvable:$true] %s120
          %s122 = sshll.u32 %s119, 4
          %126 = dma.hbm_to_vmem [thread:$0]  (%p114), %s118, %s122, %s121, %s102, 256, 128, 8
        $region20: #{tpu_custom_call.1} parent=15 // pred_fallthru
          _
      $region16: #{tpu_custom_call.1} parent=5 // pred_fallthru
        _
      %p127 = scmp.le.s32.totalorder 1, %s13
      %p128 = scmp.lt.s32.totalorder %s13, 9
      %p129 = pnand %p127, %p128
      %p130 = pneg %p129
      // Predicated region
      $region21: #{tpu_custom_call.1} parent=5 // pred_check
        _
      $region22: #{tpu_custom_call.1} parent=5 // pred_check_branch
        %132 = sbr.rel (%p129) target = $region24
      $region23: #{tpu_custom_call.1} parent=5 // pred_region
        %s133 = ssub.s32 %s13, 1
        %s134 = sand.u32 %s40, 1
        %s135 = scalar_lea.sflag [#allocation4], %s134
        %s136 = sand.u32 %s40, 1
        %s137 = smul.addr %s136, 16
        %s138 = scalar_lea.vmem [#allocation3], %s137
        // Predicated region
        $region25: #{tpu_custom_call.1} parent=23 // pred_check
          %p139 = pneg %p53
        $region26: #{tpu_custom_call.1} parent=23 // pred_check_branch
          %141 = sbr.rel (%p139) target = $region28
        $region27: #{tpu_custom_call.1} parent=23 // pred_region
          %142 = dma.done %s135, 256
        $region28: #{tpu_custom_call.1} parent=23 // pred_fallthru
          _
        %s143 = sand.u32 %s40, 1
        %s144 = scalar_lea.sflag [#allocation4], %s143
        %s145 = sand.u32 %s40, 1
        %s146 = smul.addr %s145, 16
        %s147 = scalar_lea.vmem [#allocation3], %s146
        %p148 = pneg %p53
        %p149 = pneg %p50
        %p150 = pneg %p79
        %p151 = pneg %p76
        %s152 = sand.u32 %s66, 1
        %s153 = scalar_lea.sflag [#allocation5], %s152
        %s154 = sand.u32 %s66, 1
        %s155 = smul.addr %s154, 16
        %s156 = scalar_lea.vmem [#allocation6], %s155
        %s157 = smul.u32 2, %s22
        %s158 = ssub.s32 7, %s157
        %p159 = scmp.lt.s32.totalorder %s158, 2
        %s160 = scalar_select %p159, %s158, 2
        %s161 = smul.u32 128, %s160
        %s162 = smul.u32 2, %s22
        %v163 = vld [vmem:[%s138] sm:$0xff]
        %v164 = vld [vmem:[%s138 + $0x8] sm:$0xff]
        %v165 = vlaneseq
        %v166 = vand.u32 %v165, 127
        %s167 = smul.u32 %s23, 128
        %v168 = vstv %s167
        %v169 = vadd.s32 %v166, %v168
        %vm170 = vcmp.lt.s32.totalorder %v169, 200
        %v171 = vsel %vm170, 1, 0
        %vm172 = vcmp.eq.s32.totalorder %v171, 1
        %v173 = vsel %vm172, %v163, 0.0
        %v174 = vsel %vm172, %v164, 0.0
        %v175 = vmul.f32 %v173, %v173
        %v176 = vmul.f32 %v174, %v174
        %177 = vadd.xlane.f32.xlu0 %v175
        %v178 = vpop.xlane.xlu0 %177
        %179 = vadd.xlane.f32.xlu0 %v176
        %v180 = vpop.xlane.xlu0 %179
        %p181 = scmp.eq.s32.totalorder %s23, 0
        // Predicated region
        $region29: #{tpu_custom_call.1} parent=23 // pred_check
          %p182 = pneg %p181
        $region30: #{tpu_custom_call.1} parent=23 // pred_check_branch
          %184 = sbr.rel (%p182) target = $region32
        $region31: #{tpu_custom_call.1} parent=23 // pred_region
          %vm185 = vcmask 7168
          %186 = vst.msk [vmem:[#allocation2] sm:$0xff] %vm185, 0.0
          %187 = vst.msk [vmem:[#allocation2 + $0x8] sm:$0xff] %vm185, 0.0
        $region32: #{tpu_custom_call.1} parent=23 // pred_fallthru
          _
        %v188 = vld [vmem:[#allocation2] sm:$0xff]
        %v189 = vld [vmem:[#allocation2 + $0x8] sm:$0xff]
        %v190 = vadd.f32 %v188, %v178
        %v191 = vadd.f32 %v189, %v180
        %vm192 = vcmask 7168
        %193 = vst.msk [vmem:[#allocation2] sm:$0xff] %vm192, %v190
        %194 = vst.msk [vmem:[#allocation2 + $0x8] sm:$0xff] %vm192, %v191
        %p195 = scmp.eq.s32.totalorder %s23, 1
        // Predicated region
        $region33: #{tpu_custom_call.1} parent=23 // pred_check
          %p196 = pneg %p195
        $region34: #{tpu_custom_call.1} parent=23 // pred_check_branch
          %198 = sbr.rel (%p196) target = $region36
        $region35: #{tpu_custom_call.1} parent=23 // pred_region
          %v199 = vld [vmem:[#allocation2] sm:$0xff]
          %v200 = vld [vmem:[#allocation2 + $0x8] sm:$0xff]
          %v201 = vrsqrt.pop %v199
          %v202 = vmul.f32 %v199, %v201
          %vm203 = vcmp.eq.f32.partialorder %v199, inf
          %v204 = vsel %vm203, %v199, %v202
          %vm205 = vcmp.eq.f32.partialorder %v199, 0.0
          %v206 = vand.u32 %v199, 2147483648
          %v207 = vsel %vm205, %v206, %v204
          %v208 = vrsqrt.pop %v200
          %v209 = vmul.f32 %v200, %v208
          %vm210 = vcmp.eq.f32.partialorder %v200, inf
          %v211 = vsel %vm210, %v200, %v209
          %vm212 = vcmp.eq.f32.partialorder %v200, 0.0
          %v213 = vand.u32 %v200, 2147483648
          %v214 = vsel %vm212, %v213, %v211
          %215 = vst.msk [vmem:[%s156] sm:$0xff] %vm192, %v207
          %216 = vst.msk [vmem:[%s156 + $0x8] sm:$0xff] %vm192, %v214
        $region36: #{tpu_custom_call.1} parent=23 // pred_fallthru
          _
        %s217 = sand.u32 %s66, 1
        %s218 = scalar_lea.sflag [#allocation5], %s217
        %s219 = sand.u32 %s66, 1
        %s220 = smul.addr %s219, 16
        %s221 = scalar_lea.vmem [#allocation6], %s220
        // Predicated region
        $region37: #{tpu_custom_call.1} parent=23 // pred_check
          %p222 = pneg %p76
        $region38: #{tpu_custom_call.1} parent=23 // pred_check_branch
          %224 = sbr.rel (%p222) target = $region40
        $region39: #{tpu_custom_call.1} parent=23 // pred_region
          %s225 = smul.u32 2, %s22
          %s227 = ssub.s32 256, 256
          %228 = vsyncadd %s218, %s227
          %s229 = smul.addr %s225, 128
          %s230 = scalar_lea.hbm %s1, %s229
          %s231 = sshll.u32 %s221, 4
          %s232 = int_to_ptr.vmem [resolvable:$true] %s231
          %237 = dma.vmem_to_hbm [thread:$0]  %s232, 256, %s230, %s218, 128, 128, 8
        $region40: #{tpu_custom_call.1} parent=23 // pred_fallthru
          _
      $region24: #{tpu_custom_call.1} parent=5 // pred_fallthru
        _
      %p238 = scmp.le.s32.totalorder 2, %s13
      // Predicated region
      $region41: #{tpu_custom_call.1} parent=5 // pred_check
        %p239 = pneg %p238
      $region42: #{tpu_custom_call.1} parent=5 // pred_check_branch
        %241 = sbr.rel (%p239) target = $region44
      $region43: #{tpu_custom_call.1} parent=5 // pred_region
        %s242 = ssub.s32 %s13, 2
        // Predicated region
        $region45: #{tpu_custom_call.1} parent=43 // pred_check
          %p243 = pneg %p82
        $region46: #{tpu_custom_call.1} parent=43 // pred_check_branch
          %245 = sbr.rel (%p243) target = $region48
        $region47: #{tpu_custom_call.1} parent=43 // pred_region
          %s246 = sand.u32 %s67, 1
          %s247 = scalar_lea.sflag [#allocation5], %s246
          %s248 = sand.u32 %s67, 1
          %s249 = smul.addr %s248, 16
          %s250 = scalar_lea.vmem [#allocation6], %s249
          %251 = dma.done %s247, 256
        $region48: #{tpu_custom_call.1} parent=43 // pred_fallthru
          _
      $region44: #{tpu_custom_call.1} parent=5 // pred_fallthru
        _
    $region6: #{tpu_custom_call.1} parent=1 // loop_footer
      %s17 = sadd.s32 1, %s13
    $region7: #{tpu_custom_call.1} parent=1 // loop_footer_branch
      %12 = sbr.rel target = $region3
    $region8: #{tpu_custom_call.1} parent=1 // loop_exit
      _
    %252 = vsyncpa [#allocation4], 1
    %s253 = scalar_lea.sflag [#allocation4], 1
    %254 = vsyncpa %s253, 1
    %255 = vsyncpa [#allocation5], 1
    %s256 = scalar_lea.sflag [#allocation5], 1
    %257 = vsyncpa %s256, 1

</llo_original>
